<compile_context>
chip_gen: v5e
topology: v5e:2x2
jax: 0.10.0
libtpu: 0.0.40
codegen_flags: <defaults>
</compile_context>

<pallas_src>
import functools

import jax
import jax.numpy as jnp
from jax import lax
from jax.experimental import pallas as pl
from jax.experimental.pallas import tpu as pltpu

_MAX_TOKEN_TILE = 512   # max output rows (tokens) per grid step
_GROUP = 8              # tokens per store -> one full (8, lane) sublane tile


def _round_up(x, m):
    return (x + m - 1) // m * m


def _copy_gather_kernel(ids_ref, table_hbm, out_ref, table_vmem, sem, *, tm):
    """Exact embedding row gather (no FLOPs).

    ids_ref    : (N_pad,) int32 in SMEM (scalar prefetch).
    table_hbm  : (V, E) table left in HBM (memory_space=pl.ANY).
    out_ref    : (TM, E) output tile in VMEM.
    table_vmem : (V, E) VMEM scratch; filled once at grid step 0 and kept
                 resident (single-buffered) for all remaining grid steps.
    """
    # Load the table HBM -> VMEM exactly once. The grid iterates sequentially
    # on one TensorCore ("arbitrary" axis), and scratch persists across steps.
    @pl.when(pl.program_id(0) == 0)
    def _():
        cp = pltpu.make_async_copy(table_hbm, table_vmem, sem)
        cp.start()
        cp.wait()

    base = pl.program_id(0) * tm

    # Gather 8 rows at a time so every store is a full, unmasked (8, E) tile
    # (keeps the single store slot on v5e saturated; free on v6e/v7x).
    def gather_group(g, carry):
        t0 = pl.multiple_of(g * _GROUP, _GROUP)
        rows = [
            table_vmem[pl.ds(ids_ref[base + t0 + j], 1), :]
            for j in range(_GROUP)
        ]
        out_ref[pl.ds(t0, _GROUP), :] = jnp.concatenate(rows, axis=0)
        return carry

    lax.fori_loop(0, tm // _GROUP, gather_group, 0, unroll=True)


def _embedding_lookup(table, ids):
    """table: (V, E) float32 (left in HBM); ids: (N,) int32 -> (N, E) float32."""
    n = ids.shape[0]
    v, e = table.shape

    tm = min(_MAX_TOKEN_TILE, _round_up(n, _GROUP))
    n_pad = _round_up(n, tm)
    # Pad with padding_idx (=1, a zeroed, always-in-range row); padded output
    # rows are sliced off below.
    ids_pad = jnp.pad(ids.astype(jnp.int32), (0, n_pad - n), constant_values=1)

    out = pl.pallas_call(
        functools.partial(_copy_gather_kernel, tm=tm),
        out_shape=jax.ShapeDtypeStruct((n_pad, e), table.dtype),
        grid_spec=pltpu.PrefetchScalarGridSpec(
            num_scalar_prefetch=1,                       # ids -> SMEM
            grid=(n_pad // tm,),
            in_specs=[pl.BlockSpec(memory_space=pl.ANY)],  # table stays in HBM
            out_specs=pl.BlockSpec((tm, e), lambda i, ids: (i, 0)),
            scratch_shapes=[
                pltpu.VMEM((v, e), table.dtype),         # resident table copy
                pltpu.SemaphoreType.DMA(()),
            ],
        ),
        # NOTE: vmem_limit_bytes left at default — table + (TM, E) blocks are
        # far below the 16/32 MiB scoped limits at these sizes; budget it
        # explicitly if the vocabulary grows.
        compiler_params=pltpu.CompilerParams(
            dimension_semantics=("arbitrary",),
        ),
    )(ids_pad, table)

    # TODO(synk): for production-size vocabularies that exceed VMEM (esp.
    # v7x's 64 MiB), replace the resident-table copy with per-row HBM DMAs
    # straight into the output tile (scalar-prefetch DMA gather).
    return out[:n]


@jax.jit
def embedding_forward(pin_table, word_table, query_seq, target_seq):
    """Mirrors Embedding.forward():
         sos = zeros((B, 1), int)
         target = concat([sos, target_seq], axis=1)
         query_input  = pin_embedding(query_seq)
         target_input = word_embedding(target)
    """
    b, lq = query_seq.shape
    lt = target_seq.shape[1]
    e = pin_table.shape[1]

    sos = jnp.zeros((b, 1), dtype=jnp.int32)                      # _sos_token
    tgt = jnp.concatenate([sos, target_seq.astype(jnp.int32)], axis=1)

    q_ids = query_seq.reshape(-1).astype(jnp.int32)
    t_ids = tgt.reshape(-1)

    query_input = _embedding_lookup(pin_table, q_ids).reshape(b, lq, e)
    target_input = _embedding_lookup(word_table, t_ids).reshape(b, lt + 1, e)
    return query_input, target_input


def _xavier_normal_embedding(key, num_embeddings, embedding_dim, padding_idx):
    # nn.init.xavier_normal_ on a (V, E) weight: std = sqrt(2 / (V + E)).
    std = (2.0 / (num_embeddings + embedding_dim)) ** 0.5
    w = jax.random.normal(key, (num_embeddings, embedding_dim), jnp.float32) * std
    # padding_idx row is zeroed, matching _init_embedding().
    # TODO(synk): PyTorch also freezes this row's gradient during training;
    # only the forward pass is implemented here.
    w = w.at[padding_idx].set(0.0)
    return w


if __name__ == "__main__":
    # Synthetic "config": pin_size=10, vacab_size=12, embedding_size=128.
    PIN_SIZE = 10
    VOCAB_SIZE = 12
    EMBED = 128
    PADDING_IDX = 1
    B, LQ, LT = 2, 8, 7  # target becomes LT + 1 = 8 after SOS prepend

    key = jax.random.PRNGKey(0)
    k_pin, k_word, k_q, k_t = jax.random.split(key, 4)

    pin_table = _xavier_normal_embedding(k_pin, PIN_SIZE + 3, EMBED, PADDING_IDX)
    word_table = _xavier_normal_embedding(k_word, VOCAB_SIZE + 3, EMBED, PADDING_IDX)

    query_seq = jax.random.randint(k_q, (B, LQ), 0, PIN_SIZE + 3, dtype=jnp.int32)
    target_seq = jax.random.randint(k_t, (B, LT), 0, VOCAB_SIZE + 3, dtype=jnp.int32)

    query_input, target_input = embedding_forward(
        pin_table, word_table, query_seq, target_seq)
    jax.block_until_ready((query_input, target_input))

    # Correctness check against plain-JAX reference (jnp.take gather).
    # The kernel is a pure row copy, so the match must be bit-exact.
    sos = jnp.zeros((B, 1), dtype=target_seq.dtype)
    target_cat = jnp.concatenate([sos, target_seq], axis=1)
    ref_q = jnp.take(pin_table, query_seq, axis=0)
    ref_t = jnp.take(word_table, target_cat, axis=0)

    assert query_input.shape == (B, LQ, EMBED)
    assert target_input.shape == (B, LT + 1, EMBED)
    assert jnp.array_equal(query_input, ref_q), "query embedding mismatch"
    assert jnp.array_equal(target_input, ref_t), "target embedding mismatch"

    print("KERNEL_OK")
</pallas_src>

<mosaic_0001>
module attributes {stable_mosaic.version = 11 : i64} {
  func.func @_copy_gather_kernel(%arg0: i32, %arg1: memref<16xi32, #tpu.memory_space<smem>>, %arg2: memref<15x128xf32, #tpu.memory_space<any>>, %arg3: memref<16x128xf32, #tpu.memory_space<vmem>>, %arg4: memref<15x128xf32, #tpu.memory_space<vmem>>, %arg5: memref<!tpu.dma_semaphore, #tpu.memory_space<semaphore_mem>>) attributes {dimension_semantics = [#tpu.dimension_semantics<arbitrary>], iteration_bounds = array<i64: 1>, scalar_prefetch = 1 : i64, scratch_operands = 2 : i64, tpu.core_type = #tpu.core_type<tc>, window_params = [{}, {transform_indices = @transform_1, window_bounds = array<i64: 16, 128>}]} {
    %c0_i32 = arith.constant 0 : i32
    %0 = arith.cmpi eq, %arg0, %c0_i32 : i32
    %1 = arith.extui %0 : i1 to i32
    %c0_i32_0 = arith.constant 0 : i32
    %2 = arith.cmpi ne, %1, %c0_i32_0 : i32
    scf.if %2 {
      tpu.enqueue_dma source(%arg2 : memref<15x128xf32, #tpu.memory_space<any>>) target(%arg4 : memref<15x128xf32, #tpu.memory_space<vmem>>) target_semaphore(%arg5 : memref<!tpu.dma_semaphore, #tpu.memory_space<semaphore_mem>>)
      tpu.wait_dma2 semaphore(%arg5 : memref<!tpu.dma_semaphore, #tpu.memory_space<semaphore_mem>>) src(%arg2 : memref<15x128xf32, #tpu.memory_space<any>>) dst(%arg4 : memref<15x128xf32, #tpu.memory_space<vmem>>)
    } else {
    }
    %c16_i32 = arith.constant 16 : i32
    %3 = arith.muli %arg0, %c16_i32 : i32
    %c0_i32_1 = arith.constant 0 : i32
    %c8_i32 = arith.constant 8 : i32
    %4 = arith.muli %c0_i32_1, %c8_i32 : i32
    %5 = tpu.assume_multiple %4, 8 : i32
    %6 = arith.addi %3, %5 : i32
    %c0_i32_2 = arith.constant 0 : i32
    %7 = arith.addi %6, %c0_i32_2 : i32
    %8 = arith.index_cast %7 : i32 to index
    %9 = memref.load %arg1[%8] : memref<16xi32, #tpu.memory_space<smem>>
    %10 = arith.index_cast %9 : i32 to index
    %c0 = arith.constant 0 : index
    %11 = vector.load %arg4[%10, %c0] : memref<15x128xf32, #tpu.memory_space<vmem>>, vector<1x128xf32>
    %12 = arith.addi %3, %5 : i32
    %c1_i32 = arith.constant 1 : i32
    %13 = arith.addi %12, %c1_i32 : i32
    %14 = arith.index_cast %13 : i32 to index
    %15 = memref.load %arg1[%14] : memref<16xi32, #tpu.memory_space<smem>>
    %16 = arith.index_cast %15 : i32 to index
    %c0_3 = arith.constant 0 : index
    %17 = vector.load %arg4[%16, %c0_3] : memref<15x128xf32, #tpu.memory_space<vmem>>, vector<1x128xf32>
    %18 = arith.addi %3, %5 : i32
    %c2_i32 = arith.constant 2 : i32
    %19 = arith.addi %18, %c2_i32 : i32
    %20 = arith.index_cast %19 : i32 to index
    %21 = memref.load %arg1[%20] : memref<16xi32, #tpu.memory_space<smem>>
    %22 = arith.index_cast %21 : i32 to index
    %c0_4 = arith.constant 0 : index
    %23 = vector.load %arg4[%22, %c0_4] : memref<15x128xf32, #tpu.memory_space<vmem>>, vector<1x128xf32>
    %24 = arith.addi %3, %5 : i32
    %c3_i32 = arith.constant 3 : i32
    %25 = arith.addi %24, %c3_i32 : i32
    %26 = arith.index_cast %25 : i32 to index
    %27 = memref.load %arg1[%26] : memref<16xi32, #tpu.memory_space<smem>>
    %28 = arith.index_cast %27 : i32 to index
    %c0_5 = arith.constant 0 : index
    %29 = vector.load %arg4[%28, %c0_5] : memref<15x128xf32, #tpu.memory_space<vmem>>, vector<1x128xf32>
    %30 = arith.addi %3, %5 : i32
    %c4_i32 = arith.constant 4 : i32
    %31 = arith.addi %30, %c4_i32 : i32
    %32 = arith.index_cast %31 : i32 to index
    %33 = memref.load %arg1[%32] : memref<16xi32, #tpu.memory_space<smem>>
    %34 = arith.index_cast %33 : i32 to index
    %c0_6 = arith.constant 0 : index
    %35 = vector.load %arg4[%34, %c0_6] : memref<15x128xf32, #tpu.memory_space<vmem>>, vector<1x128xf32>
    %36 = arith.addi %3, %5 : i32
    %c5_i32 = arith.constant 5 : i32
    %37 = arith.addi %36, %c5_i32 : i32
    %38 = arith.index_cast %37 : i32 to index
    %39 = memref.load %arg1[%38] : memref<16xi32, #tpu.memory_space<smem>>
    %40 = arith.index_cast %39 : i32 to index
    %c0_7 = arith.constant 0 : index
    %41 = vector.load %arg4[%40, %c0_7] : memref<15x128xf32, #tpu.memory_space<vmem>>, vector<1x128xf32>
    %42 = arith.addi %3, %5 : i32
    %c6_i32 = arith.constant 6 : i32
    %43 = arith.addi %42, %c6_i32 : i32
    %44 = arith.index_cast %43 : i32 to index
    %45 = memref.load %arg1[%44] : memref<16xi32, #tpu.memory_space<smem>>
    %46 = arith.index_cast %45 : i32 to index
    %c0_8 = arith.constant 0 : index
    %47 = vector.load %arg4[%46, %c0_8] : memref<15x128xf32, #tpu.memory_space<vmem>>, vector<1x128xf32>
    %48 = arith.addi %3, %5 : i32
    %c7_i32 = arith.constant 7 : i32
    %49 = arith.addi %48, %c7_i32 : i32
    %50 = arith.index_cast %49 : i32 to index
    %51 = memref.load %arg1[%50] : memref<16xi32, #tpu.memory_space<smem>>
    %52 = arith.index_cast %51 : i32 to index
    %c0_9 = arith.constant 0 : index
    %53 = vector.load %arg4[%52, %c0_9] : memref<15x128xf32, #tpu.memory_space<vmem>>, vector<1x128xf32>
    %54 = tpu.concatenate %11, %17, %23, %29, %35, %41, %47, %53 in 0 : vector<1x128xf32>, vector<1x128xf32>, vector<1x128xf32>, vector<1x128xf32>, vector<1x128xf32>, vector<1x128xf32>, vector<1x128xf32>, vector<1x128xf32> -> vector<8x128xf32>
    %55 = arith.index_cast %5 : i32 to index
    %c0_10 = arith.constant 0 : index
    %56 = vector.load %arg3[%55, %c0_10] : memref<16x128xf32, #tpu.memory_space<vmem>>, vector<8x128xf32>
    tpu.vector_store %arg3[%55, %c0_10], %54 {strides = array<i32>} : memref<16x128xf32, #tpu.memory_space<vmem>>, vector<8x128xf32>,
    %c1_i32_11 = arith.constant 1 : i32
    %c8_i32_12 = arith.constant 8 : i32
    %57 = arith.muli %c1_i32_11, %c8_i32_12 : i32
    %58 = tpu.assume_multiple %57, 8 : i32
    %59 = arith.addi %3, %58 : i32
    %c0_i32_13 = arith.constant 0 : i32
    %60 = arith.addi %59, %c0_i32_13 : i32
    %61 = arith.index_cast %60 : i32 to index
    %62 = memref.load %arg1[%61] : memref<16xi32, #tpu.memory_space<smem>>
    %63 = arith.index_cast %62 : i32 to index
    %c0_14 = arith.constant 0 : index
    %64 = vector.load %arg4[%63, %c0_14] : memref<15x128xf32, #tpu.memory_space<vmem>>, vector<1x128xf32>
    %65 = arith.addi %3, %58 : i32
    %c1_i32_15 = arith.constant 1 : i32
    %66 = arith.addi %65, %c1_i32_15 : i32
    %67 = arith.index_cast %66 : i32 to index
    %68 = memref.load %arg1[%67] : memref<16xi32, #tpu.memory_space<smem>>
    %69 = arith.index_cast %68 : i32 to index
    %c0_16 = arith.constant 0 : index
    %70 = vector.load %arg4[%69, %c0_16] : memref<15x128xf32, #tpu.memory_space<vmem>>, vector<1x128xf32>
    %71 = arith.addi %3, %58 : i32
    %c2_i32_17 = arith.constant 2 : i32
    %72 = arith.addi %71, %c2_i32_17 : i32
    %73 = arith.index_cast %72 : i32 to index
    %74 = memref.load %arg1[%73] : memref<16xi32, #tpu.memory_space<smem>>
    %75 = arith.index_cast %74 : i32 to index
    %c0_18 = arith.constant 0 : index
    %76 = vector.load %arg4[%75, %c0_18] : memref<15x128xf32, #tpu.memory_space<vmem>>, vector<1x128xf32>
    %77 = arith.addi %3, %58 : i32
    %c3_i32_19 = arith.constant 3 : i32
    %78 = arith.addi %77, %c3_i32_19 : i32
    %79 = arith.index_cast %78 : i32 to index
    %80 = memref.load %arg1[%79] : memref<16xi32, #tpu.memory_space<smem>>
    %81 = arith.index_cast %80 : i32 to index
    %c0_20 = arith.constant 0 : index
    %82 = vector.load %arg4[%81, %c0_20] : memref<15x128xf32, #tpu.memory_space<vmem>>, vector<1x128xf32>
    %83 = arith.addi %3, %58 : i32
    %c4_i32_21 = arith.constant 4 : i32
    %84 = arith.addi %83, %c4_i32_21 : i32
    %85 = arith.index_cast %84 : i32 to index
    %86 = memref.load %arg1[%85] : memref<16xi32, #tpu.memory_space<smem>>
    %87 = arith.index_cast %86 : i32 to index
    %c0_22 = arith.constant 0 : index
    %88 = vector.load %arg4[%87, %c0_22] : memref<15x128xf32, #tpu.memory_space<vmem>>, vector<1x128xf32>
    %89 = arith.addi %3, %58 : i32
    %c5_i32_23 = arith.constant 5 : i32
    %90 = arith.addi %89, %c5_i32_23 : i32
    %91 = arith.index_cast %90 : i32 to index
    %92 = memref.load %arg1[%91] : memref<16xi32, #tpu.memory_space<smem>>
    %93 = arith.index_cast %92 : i32 to index
    %c0_24 = arith.constant 0 : index
    %94 = vector.load %arg4[%93, %c0_24] : memref<15x128xf32, #tpu.memory_space<vmem>>, vector<1x128xf32>
    %95 = arith.addi %3, %58 : i32
    %c6_i32_25 = arith.constant 6 : i32
    %96 = arith.addi %95, %c6_i32_25 : i32
    %97 = arith.index_cast %96 : i32 to index
    %98 = memref.load %arg1[%97] : memref<16xi32, #tpu.memory_space<smem>>
    %99 = arith.index_cast %98 : i32 to index
    %c0_26 = arith.constant 0 : index
    %100 = vector.load %arg4[%99, %c0_26] : memref<15x128xf32, #tpu.memory_space<vmem>>, vector<1x128xf32>
    %101 = arith.addi %3, %58 : i32
    %c7_i32_27 = arith.constant 7 : i32
    %102 = arith.addi %101, %c7_i32_27 : i32
    %103 = arith.index_cast %102 : i32 to index
    %104 = memref.load %arg1[%103] : memref<16xi32, #tpu.memory_space<smem>>
    %105 = arith.index_cast %104 : i32 to index
    %c0_28 = arith.constant 0 : index
    %106 = vector.load %arg4[%105, %c0_28] : memref<15x128xf32, #tpu.memory_space<vmem>>, vector<1x128xf32>
    %107 = tpu.concatenate %64, %70, %76, %82, %88, %94, %100, %106 in 0 : vector<1x128xf32>, vector<1x128xf32>, vector<1x128xf32>, vector<1x128xf32>, vector<1x128xf32>, vector<1x128xf32>, vector<1x128xf32>, vector<1x128xf32> -> vector<8x128xf32>
    %108 = arith.index_cast %58 : i32 to index
    %c0_29 = arith.constant 0 : index
    %109 = vector.load %arg3[%108, %c0_29] : memref<16x128xf32, #tpu.memory_space<vmem>>, vector<8x128xf32>
    tpu.vector_store %arg3[%108, %c0_29], %107 {strides = array<i32>} : memref<16x128xf32, #tpu.memory_space<vmem>>, vector<8x128xf32>,
    %c2_i32_30 = arith.constant 2 : i32
    return
  }
  func.func @transform_1(%arg0: i32, %arg1: memref<16xi32, #tpu.memory_space<smem>>) -> (i32, i32) {
    %c0_i32 = arith.constant 0 : i32
    %c0_i32_0 = arith.constant 0 : i32
    return %arg0, %c0_i32 : i32, i32
  }
}

module attributes {stable_mosaic.version = 11 : i64} {
  func.func @_copy_gather_kernel(%arg0: i32, %arg1: memref<16xi32, #tpu.memory_space<smem>>, %arg2: memref<13x128xf32, #tpu.memory_space<any>>, %arg3: memref<16x128xf32, #tpu.memory_space<vmem>>, %arg4: memref<13x128xf32, #tpu.memory_space<vmem>>, %arg5: memref<!tpu.dma_semaphore, #tpu.memory_space<semaphore_mem>>) attributes {dimension_semantics = [#tpu.dimension_semantics<arbitrary>], iteration_bounds = array<i64: 1>, scalar_prefetch = 1 : i64, scratch_operands = 2 : i64, tpu.core_type = #tpu.core_type<tc>, window_params = [{}, {transform_indices = @transform_1, window_bounds = array<i64: 16, 128>}]} {
    %c0_i32 = arith.constant 0 : i32
    %0 = arith.cmpi eq, %arg0, %c0_i32 : i32
    %1 = arith.extui %0 : i1 to i32
    %c0_i32_0 = arith.constant 0 : i32
    %2 = arith.cmpi ne, %1, %c0_i32_0 : i32
    scf.if %2 {
      tpu.enqueue_dma source(%arg2 : memref<13x128xf32, #tpu.memory_space<any>>) target(%arg4 : memref<13x128xf32, #tpu.memory_space<vmem>>) target_semaphore(%arg5 : memref<!tpu.dma_semaphore, #tpu.memory_space<semaphore_mem>>)
      tpu.wait_dma2 semaphore(%arg5 : memref<!tpu.dma_semaphore, #tpu.memory_space<semaphore_mem>>) src(%arg2 : memref<13x128xf32, #tpu.memory_space<any>>) dst(%arg4 : memref<13x128xf32, #tpu.memory_space<vmem>>)
    } else {
    }
    %c16_i32 = arith.constant 16 : i32
    %3 = arith.muli %arg0, %c16_i32 : i32
    %c0_i32_1 = arith.constant 0 : i32
    %c8_i32 = arith.constant 8 : i32
    %4 = arith.muli %c0_i32_1, %c8_i32 : i32
    %5 = tpu.assume_multiple %4, 8 : i32
    %6 = arith.addi %3, %5 : i32
    %c0_i32_2 = arith.constant 0 : i32
    %7 = arith.addi %6, %c0_i32_2 : i32
    %8 = arith.index_cast %7 : i32 to index
    %9 = memref.load %arg1[%8] : memref<16xi32, #tpu.memory_space<smem>>
    %10 = arith.index_cast %9 : i32 to index
    %c0 = arith.constant 0 : index
    %11 = vector.load %arg4[%10, %c0] : memref<13x128xf32, #tpu.memory_space<vmem>>, vector<1x128xf32>
    %12 = arith.addi %3, %5 : i32
    %c1_i32 = arith.constant 1 : i32
    %13 = arith.addi %12, %c1_i32 : i32
    %14 = arith.index_cast %13 : i32 to index
    %15 = memref.load %arg1[%14] : memref<16xi32, #tpu.memory_space<smem>>
    %16 = arith.index_cast %15 : i32 to index
    %c0_3 = arith.constant 0 : index
    %17 = vector.load %arg4[%16, %c0_3] : memref<13x128xf32, #tpu.memory_space<vmem>>, vector<1x128xf32>
    %18 = arith.addi %3, %5 : i32
    %c2_i32 = arith.constant 2 : i32
    %19 = arith.addi %18, %c2_i32 : i32
    %20 = arith.index_cast %19 : i32 to index
    %21 = memref.load %arg1[%20] : memref<16xi32, #tpu.memory_space<smem>>
    %22 = arith.index_cast %21 : i32 to index
    %c0_4 = arith.constant 0 : index
    %23 = vector.load %arg4[%22, %c0_4] : memref<13x128xf32, #tpu.memory_space<vmem>>, vector<1x128xf32>
    %24 = arith.addi %3, %5 : i32
    %c3_i32 = arith.constant 3 : i32
    %25 = arith.addi %24, %c3_i32 : i32
    %26 = arith.index_cast %25 : i32 to index
    %27 = memref.load %arg1[%26] : memref<16xi32, #tpu.memory_space<smem>>
    %28 = arith.index_cast %27 : i32 to index
    %c0_5 = arith.constant 0 : index
    %29 = vector.load %arg4[%28, %c0_5] : memref<13x128xf32, #tpu.memory_space<vmem>>, vector<1x128xf32>
    %30 = arith.addi %3, %5 : i32
    %c4_i32 = arith.constant 4 : i32
    %31 = arith.addi %30, %c4_i32 : i32
    %32 = arith.index_cast %31 : i32 to index
    %33 = memref.load %arg1[%32] : memref<16xi32, #tpu.memory_space<smem>>
    %34 = arith.index_cast %33 : i32 to index
    %c0_6 = arith.constant 0 : index
    %35 = vector.load %arg4[%34, %c0_6] : memref<13x128xf32, #tpu.memory_space<vmem>>, vector<1x128xf32>
    %36 = arith.addi %3, %5 : i32
    %c5_i32 = arith.constant 5 : i32
    %37 = arith.addi %36, %c5_i32 : i32
    %38 = arith.index_cast %37 : i32 to index
    %39 = memref.load %arg1[%38] : memref<16xi32, #tpu.memory_space<smem>>
    %40 = arith.index_cast %39 : i32 to index
    %c0_7 = arith.constant 0 : index
    %41 = vector.load %arg4[%40, %c0_7] : memref<13x128xf32, #tpu.memory_space<vmem>>, vector<1x128xf32>
    %42 = arith.addi %3, %5 : i32
    %c6_i32 = arith.constant 6 : i32
    %43 = arith.addi %42, %c6_i32 : i32
    %44 = arith.index_cast %43 : i32 to index
    %45 = memref.load %arg1[%44] : memref<16xi32, #tpu.memory_space<smem>>
    %46 = arith.index_cast %45 : i32 to index
    %c0_8 = arith.constant 0 : index
    %47 = vector.load %arg4[%46, %c0_8] : memref<13x128xf32, #tpu.memory_space<vmem>>, vector<1x128xf32>
    %48 = arith.addi %3, %5 : i32
    %c7_i32 = arith.constant 7 : i32
    %49 = arith.addi %48, %c7_i32 : i32
    %50 = arith.index_cast %49 : i32 to index
    %51 = memref.load %arg1[%50] : memref<16xi32, #tpu.memory_space<smem>>
    %52 = arith.index_cast %51 : i32 to index
    %c0_9 = arith.constant 0 : index
    %53 = vector.load %arg4[%52, %c0_9] : memref<13x128xf32, #tpu.memory_space<vmem>>, vector<1x128xf32>
    %54 = tpu.concatenate %11, %17, %23, %29, %35, %41, %47, %53 in 0 : vector<1x128xf32>, vector<1x128xf32>, vector<1x128xf32>, vector<1x128xf32>, vector<1x128xf32>, vector<1x128xf32>, vector<1x128xf32>, vector<1x128xf32> -> vector<8x128xf32>
    %55 = arith.index_cast %5 : i32 to index
    %c0_10 = arith.constant 0 : index
    %56 = vector.load %arg3[%55, %c0_10] : memref<16x128xf32, #tpu.memory_space<vmem>>, vector<8x128xf32>
    tpu.vector_store %arg3[%55, %c0_10], %54 {strides = array<i32>} : memref<16x128xf32, #tpu.memory_space<vmem>>, vector<8x128xf32>,
    %c1_i32_11 = arith.constant 1 : i32
    %c8_i32_12 = arith.constant 8 : i32
    %57 = arith.muli %c1_i32_11, %c8_i32_12 : i32
    %58 = tpu.assume_multiple %57, 8 : i32
    %59 = arith.addi %3, %58 : i32
    %c0_i32_13 = arith.constant 0 : i32
    %60 = arith.addi %59, %c0_i32_13 : i32
    %61 = arith.index_cast %60 : i32 to index
    %62 = memref.load %arg1[%61] : memref<16xi32, #tpu.memory_space<smem>>
    %63 = arith.index_cast %62 : i32 to index
    %c0_14 = arith.constant 0 : index
    %64 = vector.load %arg4[%63, %c0_14] : memref<13x128xf32, #tpu.memory_space<vmem>>, vector<1x128xf32>
    %65 = arith.addi %3, %58 : i32
    %c1_i32_15 = arith.constant 1 : i32
    %66 = arith.addi %65, %c1_i32_15 : i32
    %67 = arith.index_cast %66 : i32 to index
    %68 = memref.load %arg1[%67] : memref<16xi32, #tpu.memory_space<smem>>
    %69 = arith.index_cast %68 : i32 to index
    %c0_16 = arith.constant 0 : index
    %70 = vector.load %arg4[%69, %c0_16] : memref<13x128xf32, #tpu.memory_space<vmem>>, vector<1x128xf32>
    %71 = arith.addi %3, %58 : i32
    %c2_i32_17 = arith.constant 2 : i32
    %72 = arith.addi %71, %c2_i32_17 : i32
    %73 = arith.index_cast %72 : i32 to index
    %74 = memref.load %arg1[%73] : memref<16xi32, #tpu.memory_space<smem>>
    %75 = arith.index_cast %74 : i32 to index
    %c0_18 = arith.constant 0 : index
    %76 = vector.load %arg4[%75, %c0_18] : memref<13x128xf32, #tpu.memory_space<vmem>>, vector<1x128xf32>
    %77 = arith.addi %3, %58 : i32
    %c3_i32_19 = arith.constant 3 : i32
    %78 = arith.addi %77, %c3_i32_19 : i32
    %79 = arith.index_cast %78 : i32 to index
    %80 = memref.load %arg1[%79] : memref<16xi32, #tpu.memory_space<smem>>
    %81 = arith.index_cast %80 : i32 to index
    %c0_20 = arith.constant 0 : index
    %82 = vector.load %arg4[%81, %c0_20] : memref<13x128xf32, #tpu.memory_space<vmem>>, vector<1x128xf32>
    %83 = arith.addi %3, %58 : i32
    %c4_i32_21 = arith.constant 4 : i32
    %84 = arith.addi %83, %c4_i32_21 : i32
    %85 = arith.index_cast %84 : i32 to index
    %86 = memref.load %arg1[%85] : memref<16xi32, #tpu.memory_space<smem>>
    %87 = arith.index_cast %86 : i32 to index
    %c0_22 = arith.constant 0 : index
    %88 = vector.load %arg4[%87, %c0_22] : memref<13x128xf32, #tpu.memory_space<vmem>>, vector<1x128xf32>
    %89 = arith.addi %3, %58 : i32
    %c5_i32_23 = arith.constant 5 : i32
    %90 = arith.addi %89, %c5_i32_23 : i32
    %91 = arith.index_cast %90 : i32 to index
    %92 = memref.load %arg1[%91] : memref<16xi32, #tpu.memory_space<smem>>
    %93 = arith.index_cast %92 : i32 to index
    %c0_24 = arith.constant 0 : index
    %94 = vector.load %arg4[%93, %c0_24] : memref<13x128xf32, #tpu.memory_space<vmem>>, vector<1x128xf32>
    %95 = arith.addi %3, %58 : i32
    %c6_i32_25 = arith.constant 6 : i32
    %96 = arith.addi %95, %c6_i32_25 : i32
    %97 = arith.index_cast %96 : i32 to index
    %98 = memref.load %arg1[%97] : memref<16xi32, #tpu.memory_space<smem>>
    %99 = arith.index_cast %98 : i32 to index
    %c0_26 = arith.constant 0 : index
    %100 = vector.load %arg4[%99, %c0_26] : memref<13x128xf32, #tpu.memory_space<vmem>>, vector<1x128xf32>
    %101 = arith.addi %3, %58 : i32
    %c7_i32_27 = arith.constant 7 : i32
    %102 = arith.addi %101, %c7_i32_27 : i32
    %103 = arith.index_cast %102 : i32 to index
    %104 = memref.load %arg1[%103] : memref<16xi32, #tpu.memory_space<smem>>
    %105 = arith.index_cast %104 : i32 to index
    %c0_28 = arith.constant 0 : index
    %106 = vector.load %arg4[%105, %c0_28] : memref<13x128xf32, #tpu.memory_space<vmem>>, vector<1x128xf32>
    %107 = tpu.concatenate %64, %70, %76, %82, %88, %94, %100, %106 in 0 : vector<1x128xf32>, vector<1x128xf32>, vector<1x128xf32>, vector<1x128xf32>, vector<1x128xf32>, vector<1x128xf32>, vector<1x128xf32>, vector<1x128xf32> -> vector<8x128xf32>
    %108 = arith.index_cast %58 : i32 to index
    %c0_29 = arith.constant 0 : index
    %109 = vector.load %arg3[%108, %c0_29] : memref<16x128xf32, #tpu.memory_space<vmem>>, vector<8x128xf32>
    tpu.vector_store %arg3[%108, %c0_29], %107 {strides = array<i32>} : memref<16x128xf32, #tpu.memory_space<vmem>>, vector<8x128xf32>,
    %c2_i32_30 = arith.constant 2 : i32
    return
  }
  func.func @transform_1(%arg0: i32, %arg1: memref<16xi32, #tpu.memory_space<smem>>) -> (i32, i32) {
    %c0_i32 = arith.constant 0 : i32
    %c0_i32_0 = arith.constant 0 : i32
    return %arg0, %c0_i32 : i32, i32
  }
}

</mosaic_0001>

<llo_original>
// kernel: embedding_forward.2
$region0: #{embedding_forward.2}
  #allocation0 [shape = 'u32[]', space=smem, size = 0x4, offset = 0x4, fixed_abs, tag = 'smem constant byte address 0x4 - core index']
  #allocation1 [shape = 'u32[72,128]{1,0:T(1,128)}', space=vmem, size = 0x9000, scoped, tag = 'internal scratch']
  #allocation2 [shape = 'f32[13,128]{1,0:T(8,128)}', space=vmem, size = 0x2000, scoped, tag = 'scratch operand']
  #allocation3 [shape = 's32[1]{0}', space=sflag, size = 0x4, scoped, tag = 'scratch operand']
  #allocation4 [shape = 's32[1]{0}', space=sflag, size = 0x4, scoped, tag = 'scoped memory for embedding_forward.2']
  #allocation5 [shape = 'u8[512]{0}', space=smem, size = 0x200, scoped, tag = 'prefetched SMEM operand 0']
  #allocation8 [shape = 's32[]', space=sflag, size = 0x4, offset = 0, fixed_abs, tag = 'sflag constant byte address 0x0 - dummy sync flag']
  #allocation9 [shape = 's32[]', space=sflag, size = 0x4, offset = 0, fixed_abs, tag = 'sflag constant byte address 0x0 - dummy sync flag']
  #allocation10 [shape = 'u32[]', space=smem, size = 0x4, offset = 0x44, fixed_abs, tag = 'smem constant byte address 0x44 - assertion arg 0']
  #allocation11 [shape = 'u32[]', space=smem, size = 0x4, offset = 0x48, fixed_abs, tag = 'smem constant byte address 0x48 - assertion arg 1']
  %s0 = inlined_call_operand.vmem [shape: s32[16], index: 0, kind: input, shape index: {}]
  %s1 = inlined_call_operand.hbm [shape: f32[13,128], index: 1, kind: input, shape index: {}]
  %s2 = inlined_call_operand.hbm [shape: f32[16,128], index: 2, kind: output, shape index: {}]
  %s3 = sld [smem:[#allocation0]]
  $region18: #{embedding_forward.2} parent=0
    _
  %s5 = ssub.s32 1, %s3
  %s6 = scalar_select 0, %s5, %s3
  %s8 = sshll.u32 %s0, 4
  %s9 = int_to_ptr.vmem [resolvable:$true] %s8
  %11 = dma.vmem_to_smem %s9, 16, [#allocation5], [#allocation4]
  %13 = dma.done [#allocation4], 16
  %14 = sfence
  $region1: #{embedding_forward.2} parent=0
    #allocation6 [shape = 'u8[8192]{0}', space=vmem, size = 0x2000, scoped, tag = 'output window, operand 0, single buffered']
    #allocation7 [shape = 's32[1]{0}', space=sflag, size = 0x4, scoped, tag = 'scoped memory for embedding_forward.2']
    %15 = vsyncpa [#allocation7], 0
    %p16 = scmp.eq.s32.totalorder 0, 0
    // Predicated region
    $region2: #{embedding_forward.2} parent=1 // pred_check
      %p17 = pneg %p16
    $region3: #{embedding_forward.2} parent=1 // pred_check_branch
      %19 = sbr.rel (%p17) target = $region5
    $region4: #{embedding_forward.2} parent=1 // pred_region
      // Predicated region
      $region6: #{embedding_forward.2} parent=4 // pred_check
        _
      $region7: #{embedding_forward.2} parent=4 // pred_check_branch
        %21 = sbr.rel target = $region9
      $region8: #{embedding_forward.2} parent=4 // pred_region
        %22 = sst [smem:[#allocation10]] [#allocation9]
        %23 = sst [smem:[#allocation11]] [#allocation8]
      $region9: #{embedding_forward.2} parent=4 // pred_fallthru
        _
      %25 = shalt.err (0)
      %s27 = sshll.u32 %s1, 4
      %s28 = int_to_ptr.hbm [resolvable:$true] %s27
      %s29 = sshll.u32 [#allocation2], 4
      %s30 = int_to_ptr.vmem [resolvable:$true] %s29
      %32 = dma.hbm_to_vmem [thread:$0]  %s28, 208, %s30, [#allocation3]
      %s33 = smul.u32 13, 1
      %s34 = sshll.u32 %s33, 4
      %35 = dma.done [#allocation3], %s34
    $region5: #{embedding_forward.2} parent=1 // pred_fallthru
      _
    %s36 = smul.u32 0, 16
    %s37 = sadd.s32 %s36, 0
    %s38 = sld [smem:[#allocation5 + %s37]]
    %s39 = scalar_lea.vmem [#allocation2], %s38
    %v40 = vld [vmem:[%s39] sm:$0x1]
    %s41 = sadd.s32 %s37, 1
    %s42 = sld [smem:[#allocation5 + %s41]]
    %s43 = scalar_lea.vmem [#allocation2], %s42
    %v44 = vld [vmem:[%s43] sm:$0x1]
    %s45 = sadd.s32 %s37, 2
    %s46 = sld [smem:[#allocation5 + %s45]]
    %s47 = scalar_lea.vmem [#allocation2], %s46
    %v48 = vld [vmem:[%s47] sm:$0x1]
    %s49 = sadd.s32 %s37, 3
    %s50 = sld [smem:[#allocation5 + %s49]]
    %s51 = scalar_lea.vmem [#allocation2], %s50
    %v52 = vld [vmem:[%s51] sm:$0x1]
    %s53 = sadd.s32 %s37, 4
    %s54 = sld [smem:[#allocation5 + %s53]]
    %s55 = scalar_lea.vmem [#allocation2], %s54
    %v56 = vld [vmem:[%s55] sm:$0x1]
    %s57 = sadd.s32 %s37, 5
    %s58 = sld [smem:[#allocation5 + %s57]]
    %s59 = scalar_lea.vmem [#allocation2], %s58
    %v60 = vld [vmem:[%s59] sm:$0x1]
    %s61 = sadd.s32 %s37, 6
    %s62 = sld [smem:[#allocation5 + %s61]]
    %s63 = scalar_lea.vmem [#allocation2], %s62
    %v64 = vld [vmem:[%s63] sm:$0x1]
    %s65 = sadd.s32 %s37, 7
    %s66 = sld [smem:[#allocation5 + %s65]]
    %s67 = scalar_lea.vmem [#allocation2], %s66
    %v68 = vld [vmem:[%s67] sm:$0x1]
    %v70 = vrot.slane %v44, 7
    %v73 = vrot.slane %v48, 6
    %v76 = vrot.slane %v52, 5
    %v79 = vrot.slane %v56, 4
    %v82 = vrot.slane %v60, 3
    %v85 = vrot.slane %v64, 2
    %v88 = vrot.slane %v68, 1
    %vm90 = vcmask 1040384
    %v91 = vsel %vm90, %v40, %v70
    %vm92 = vcmask 1041408
    %v93 = vsel %vm92, %v91, %v73
    %vm94 = vcmask 1042432
    %v95 = vsel %vm94, %v93, %v76
    %vm96 = vcmask 1043456
    %v97 = vsel %vm96, %v95, %v79
    %vm98 = vcmask 1044480
    %v99 = vsel %vm98, %v97, %v82
    %vm100 = vcmask 1045504
    %v101 = vsel %vm100, %v99, %v85
    %vm102 = vcmask 1046528
    %v103 = vsel %vm102, %v101, %v88
    %104 = vst [vmem:[#allocation6] sm:$0xff] %v103
    %s105 = sadd.s32 %s36, 8
    %s106 = sld [smem:[#allocation5 + %s105]]
    %s107 = scalar_lea.vmem [#allocation2], %s106
    %v108 = vld [vmem:[%s107] sm:$0x1]
    %s109 = sadd.s32 %s105, 1
    %s110 = sld [smem:[#allocation5 + %s109]]
    %s111 = scalar_lea.vmem [#allocation2], %s110
    %v112 = vld [vmem:[%s111] sm:$0x1]
    %s113 = sadd.s32 %s105, 2
    %s114 = sld [smem:[#allocation5 + %s113]]
    %s115 = scalar_lea.vmem [#allocation2], %s114
    %v116 = vld [vmem:[%s115] sm:$0x1]
    %s117 = sadd.s32 %s105, 3
    %s118 = sld [smem:[#allocation5 + %s117]]
    %s119 = scalar_lea.vmem [#allocation2], %s118
    %v120 = vld [vmem:[%s119] sm:$0x1]
    %s121 = sadd.s32 %s105, 4
    %s122 = sld [smem:[#allocation5 + %s121]]
    %s123 = scalar_lea.vmem [#allocation2], %s122
    %v124 = vld [vmem:[%s123] sm:$0x1]
    %s125 = sadd.s32 %s105, 5
    %s126 = sld [smem:[#allocation5 + %s125]]
    %s127 = scalar_lea.vmem [#allocation2], %s126
    %v128 = vld [vmem:[%s127] sm:$0x1]
    %s129 = sadd.s32 %s105, 6
    %s130 = sld [smem:[#allocation5 + %s129]]
    %s131 = scalar_lea.vmem [#allocation2], %s130
    %v132 = vld [vmem:[%s131] sm:$0x1]
    %s133 = sadd.s32 %s105, 7
    %s134 = sld [smem:[#allocation5 + %s133]]
    %s135 = scalar_lea.vmem [#allocation2], %s134
    %v136 = vld [vmem:[%s135] sm:$0x1]
    %v138 = vrot.slane %v112, 7
    %v141 = vrot.slane %v116, 6
    %v144 = vrot.slane %v120, 5
    %v147 = vrot.slane %v124, 4
    %v150 = vrot.slane %v128, 3
    %v153 = vrot.slane %v132, 2
    %v156 = vrot.slane %v136, 1
    %v158 = vsel %vm90, %v108, %v138
    %v159 = vsel %vm92, %v158, %v141
    %v160 = vsel %vm94, %v159, %v144
    %v161 = vsel %vm96, %v160, %v147
    %v162 = vsel %vm98, %v161, %v150
    %v163 = vsel %vm100, %v162, %v153
    %v164 = vsel %vm102, %v163, %v156
    %s165 = scalar_lea.vmem [#allocation6], 8
    %166 = vst [vmem:[%s165] sm:$0xff] %v164
    // Predicated region
    $region10: #{embedding_forward.2} parent=1 // pred_check
      _
    $region11: #{embedding_forward.2} parent=1 // pred_check_branch
      %168 = sbr.rel (0) target = $region13
    $region12: #{embedding_forward.2} parent=1 // pred_region
      %170 = vsyncadd [#allocation7], 0
      %s171 = sshll.u32 [#allocation6], 4
      %s172 = int_to_ptr.vmem [resolvable:$true] %s171
      %s173 = sshll.u32 %s2, 4
      %s174 = int_to_ptr.hbm [resolvable:$true] %s173
      %179 = dma.vmem_to_hbm [thread:$0]  %s172, 256, %s174, [#allocation7], 128, 128, 8
    $region13: #{embedding_forward.2} parent=1 // pred_fallthru
      _
    // Predicated region
    $region14: #{embedding_forward.2} parent=1 // pred_check
      _
    $region15: #{embedding_forward.2} parent=1 // pred_check_branch
      %181 = sbr.rel (0) target = $region17
    $region16: #{embedding_forward.2} parent=1 // pred_region
      %183 = dma.done [#allocation7], 256
    $region17: #{embedding_forward.2} parent=1 // pred_fallthru
      _
    %184 = vsyncpa [#allocation7], 1
  %185 = vsyncmov [#allocation3]
  %s186 = vpop.sfrf %185
  %p187 = scmp.eq.s32.totalorder %s186, 0
  %p188 = pneg %p187
  %190 = shalt.err (%p188)

// kernel: embedding_forward.3
$region0: #{embedding_forward.3}
  #allocation0 [shape = 'u32[]', space=smem, size = 0x4, offset = 0x4, fixed_abs, tag = 'smem constant byte address 0x4 - core index']
  #allocation1 [shape = 'u32[72,128]{1,0:T(1,128)}', space=vmem, size = 0x9000, scoped, tag = 'internal scratch']
  #allocation2 [shape = 'f32[15,128]{1,0:T(8,128)}', space=vmem, size = 0x2000, scoped, tag = 'scratch operand']
  #allocation3 [shape = 's32[1]{0}', space=sflag, size = 0x4, scoped, tag = 'scratch operand']
  #allocation4 [shape = 's32[1]{0}', space=sflag, size = 0x4, scoped, tag = 'scoped memory for embedding_forward.3']
  #allocation5 [shape = 'u8[512]{0}', space=smem, size = 0x200, scoped, tag = 'prefetched SMEM operand 0']
  #allocation8 [shape = 's32[]', space=sflag, size = 0x4, offset = 0, fixed_abs, tag = 'sflag constant byte address 0x0 - dummy sync flag']
  #allocation9 [shape = 's32[]', space=sflag, size = 0x4, offset = 0, fixed_abs, tag = 'sflag constant byte address 0x0 - dummy sync flag']
  #allocation10 [shape = 'u32[]', space=smem, size = 0x4, offset = 0x44, fixed_abs, tag = 'smem constant byte address 0x44 - assertion arg 0']
  #allocation11 [shape = 'u32[]', space=smem, size = 0x4, offset = 0x48, fixed_abs, tag = 'smem constant byte address 0x48 - assertion arg 1']
  %s0 = inlined_call_operand.vmem [shape: s32[16], index: 0, kind: input, shape index: {}]
  %s1 = inlined_call_operand.hbm [shape: f32[15,128], index: 1, kind: input, shape index: {}]
  %s2 = inlined_call_operand.hbm [shape: f32[16,128], index: 2, kind: output, shape index: {}]
  %s3 = sld [smem:[#allocation0]]
  $region18: #{embedding_forward.3} parent=0
    _
  %s5 = ssub.s32 1, %s3
  %s6 = scalar_select 0, %s5, %s3
  %s8 = sshll.u32 %s0, 4
  %s9 = int_to_ptr.vmem [resolvable:$true] %s8
  %11 = dma.vmem_to_smem %s9, 16, [#allocation5], [#allocation4]
  %13 = dma.done [#allocation4], 16
  %14 = sfence
  $region1: #{embedding_forward.3} parent=0
    #allocation6 [shape = 'u8[8192]{0}', space=vmem, size = 0x2000, scoped, tag = 'output window, operand 0, single buffered']
    #allocation7 [shape = 's32[1]{0}', space=sflag, size = 0x4, scoped, tag = 'scoped memory for embedding_forward.3']
    %15 = vsyncpa [#allocation7], 0
    %p16 = scmp.eq.s32.totalorder 0, 0
    // Predicated region
    $region2: #{embedding_forward.3} parent=1 // pred_check
      %p17 = pneg %p16
    $region3: #{embedding_forward.3} parent=1 // pred_check_branch
      %19 = sbr.rel (%p17) target = $region5
    $region4: #{embedding_forward.3} parent=1 // pred_region
      // Predicated region
      $region6: #{embedding_forward.3} parent=4 // pred_check
        _
      $region7: #{embedding_forward.3} parent=4 // pred_check_branch
        %21 = sbr.rel target = $region9
      $region8: #{embedding_forward.3} parent=4 // pred_region
        %22 = sst [smem:[#allocation10]] [#allocation9]
        %23 = sst [smem:[#allocation11]] [#allocation8]
      $region9: #{embedding_forward.3} parent=4 // pred_fallthru
        _
      %25 = shalt.err (0)
      %s27 = sshll.u32 %s1, 4
      %s28 = int_to_ptr.hbm [resolvable:$true] %s27
      %s29 = sshll.u32 [#allocation2], 4
      %s30 = int_to_ptr.vmem [resolvable:$true] %s29
      %32 = dma.hbm_to_vmem [thread:$0]  %s28, 240, %s30, [#allocation3]
      %s33 = smul.u32 15, 1
      %s34 = sshll.u32 %s33, 4
      %35 = dma.done [#allocation3], %s34
    $region5: #{embedding_forward.3} parent=1 // pred_fallthru
      _
    %s36 = smul.u32 0, 16
    %s37 = sadd.s32 %s36, 0
    %s38 = sld [smem:[#allocation5 + %s37]]
    %s39 = scalar_lea.vmem [#allocation2], %s38
    %v40 = vld [vmem:[%s39] sm:$0x1]
    %s41 = sadd.s32 %s37, 1
    %s42 = sld [smem:[#allocation5 + %s41]]
    %s43 = scalar_lea.vmem [#allocation2], %s42
    %v44 = vld [vmem:[%s43] sm:$0x1]
    %s45 = sadd.s32 %s37, 2
    %s46 = sld [smem:[#allocation5 + %s45]]
    %s47 = scalar_lea.vmem [#allocation2], %s46
    %v48 = vld [vmem:[%s47] sm:$0x1]
    %s49 = sadd.s32 %s37, 3
    %s50 = sld [smem:[#allocation5 + %s49]]
    %s51 = scalar_lea.vmem [#allocation2], %s50
    %v52 = vld [vmem:[%s51] sm:$0x1]
    %s53 = sadd.s32 %s37, 4
    %s54 = sld [smem:[#allocation5 + %s53]]
    %s55 = scalar_lea.vmem [#allocation2], %s54
    %v56 = vld [vmem:[%s55] sm:$0x1]
    %s57 = sadd.s32 %s37, 5
    %s58 = sld [smem:[#allocation5 + %s57]]
    %s59 = scalar_lea.vmem [#allocation2], %s58
    %v60 = vld [vmem:[%s59] sm:$0x1]
    %s61 = sadd.s32 %s37, 6
    %s62 = sld [smem:[#allocation5 + %s61]]
    %s63 = scalar_lea.vmem [#allocation2], %s62
    %v64 = vld [vmem:[%s63] sm:$0x1]
    %s65 = sadd.s32 %s37, 7
    %s66 = sld [smem:[#allocation5 + %s65]]
    %s67 = scalar_lea.vmem [#allocation2], %s66
    %v68 = vld [vmem:[%s67] sm:$0x1]
    %v70 = vrot.slane %v44, 7
    %v73 = vrot.slane %v48, 6
    %v76 = vrot.slane %v52, 5
    %v79 = vrot.slane %v56, 4
    %v82 = vrot.slane %v60, 3
    %v85 = vrot.slane %v64, 2
    %v88 = vrot.slane %v68, 1
    %vm90 = vcmask 1040384
    %v91 = vsel %vm90, %v40, %v70
    %vm92 = vcmask 1041408
    %v93 = vsel %vm92, %v91, %v73
    %vm94 = vcmask 1042432
    %v95 = vsel %vm94, %v93, %v76
    %vm96 = vcmask 1043456
    %v97 = vsel %vm96, %v95, %v79
    %vm98 = vcmask 1044480
    %v99 = vsel %vm98, %v97, %v82
    %vm100 = vcmask 1045504
    %v101 = vsel %vm100, %v99, %v85
    %vm102 = vcmask 1046528
    %v103 = vsel %vm102, %v101, %v88
    %104 = vst [vmem:[#allocation6] sm:$0xff] %v103
    %s105 = sadd.s32 %s36, 8
    %s106 = sld [smem:[#allocation5 + %s105]]
    %s107 = scalar_lea.vmem [#allocation2], %s106
    %v108 = vld [vmem:[%s107] sm:$0x1]
    %s109 = sadd.s32 %s105, 1
    %s110 = sld [smem:[#allocation5 + %s109]]
    %s111 = scalar_lea.vmem [#allocation2], %s110
    %v112 = vld [vmem:[%s111] sm:$0x1]
    %s113 = sadd.s32 %s105, 2
    %s114 = sld [smem:[#allocation5 + %s113]]
    %s115 = scalar_lea.vmem [#allocation2], %s114
    %v116 = vld [vmem:[%s115] sm:$0x1]
    %s117 = sadd.s32 %s105, 3
    %s118 = sld [smem:[#allocation5 + %s117]]
    %s119 = scalar_lea.vmem [#allocation2], %s118
    %v120 = vld [vmem:[%s119] sm:$0x1]
    %s121 = sadd.s32 %s105, 4
    %s122 = sld [smem:[#allocation5 + %s121]]
    %s123 = scalar_lea.vmem [#allocation2], %s122
    %v124 = vld [vmem:[%s123] sm:$0x1]
    %s125 = sadd.s32 %s105, 5
    %s126 = sld [smem:[#allocation5 + %s125]]
    %s127 = scalar_lea.vmem [#allocation2], %s126
    %v128 = vld [vmem:[%s127] sm:$0x1]
    %s129 = sadd.s32 %s105, 6
    %s130 = sld [smem:[#allocation5 + %s129]]
    %s131 = scalar_lea.vmem [#allocation2], %s130
    %v132 = vld [vmem:[%s131] sm:$0x1]
    %s133 = sadd.s32 %s105, 7
    %s134 = sld [smem:[#allocation5 + %s133]]
    %s135 = scalar_lea.vmem [#allocation2], %s134
    %v136 = vld [vmem:[%s135] sm:$0x1]
    %v138 = vrot.slane %v112, 7
    %v141 = vrot.slane %v116, 6
    %v144 = vrot.slane %v120, 5
    %v147 = vrot.slane %v124, 4
    %v150 = vrot.slane %v128, 3
    %v153 = vrot.slane %v132, 2
    %v156 = vrot.slane %v136, 1
    %v158 = vsel %vm90, %v108, %v138
    %v159 = vsel %vm92, %v158, %v141
    %v160 = vsel %vm94, %v159, %v144
    %v161 = vsel %vm96, %v160, %v147
    %v162 = vsel %vm98, %v161, %v150
    %v163 = vsel %vm100, %v162, %v153
    %v164 = vsel %vm102, %v163, %v156
    %s165 = scalar_lea.vmem [#allocation6], 8
    %166 = vst [vmem:[%s165] sm:$0xff] %v164
    // Predicated region
    $region10: #{embedding_forward.3} parent=1 // pred_check
      _
    $region11: #{embedding_forward.3} parent=1 // pred_check_branch
      %168 = sbr.rel (0) target = $region13
    $region12: #{embedding_forward.3} parent=1 // pred_region
      %170 = vsyncadd [#allocation7], 0
      %s171 = sshll.u32 [#allocation6], 4
      %s172 = int_to_ptr.vmem [resolvable:$true] %s171
      %s173 = sshll.u32 %s2, 4
      %s174 = int_to_ptr.hbm [resolvable:$true] %s173
      %179 = dma.vmem_to_hbm [thread:$0]  %s172, 256, %s174, [#allocation7], 128, 128, 8
    $region13: #{embedding_forward.3} parent=1 // pred_fallthru
      _
    // Predicated region
    $region14: #{embedding_forward.3} parent=1 // pred_check
      _
    $region15: #{embedding_forward.3} parent=1 // pred_check_branch
      %181 = sbr.rel (0) target = $region17
    $region16: #{embedding_forward.3} parent=1 // pred_region
      %183 = dma.done [#allocation7], 256
    $region17: #{embedding_forward.3} parent=1 // pred_fallthru
      _
    %184 = vsyncpa [#allocation7], 1
  %185 = vsyncmov [#allocation3]
  %s186 = vpop.sfrf %185
  %p187 = scmp.eq.s32.totalorder %s186, 0
  %p188 = pneg %p187
  %190 = shalt.err (%p188)

</llo_original>
